<compile_context>
chip_gen: v7x
topology: tpu7x:2x2x1
jax: 0.10.0
libtpu: 0.0.40
codegen_flags: <defaults>
</compile_context>

<pallas_src>
import functools

import jax
import jax.numpy as jnp
import numpy as np
from jax import lax
from jax.experimental import pallas as pl
from jax.experimental.pallas import tpu as pltpu


# ----------------------------------------------------------------------------
# Hardware-dependent budgets.
# ----------------------------------------------------------------------------
def _vmem_limit_bytes():
    """Per-generation VMEM budget: ~3/4 of physical capacity, capped at
    100 MiB (v5e/v6e: 128 MiB physical -> ~96-100 MiB; v7x: 64 MiB -> 48 MiB).
    Falls back to 48 MiB if the query is unavailable."""
    cap = None
    try:
        info = pltpu.get_tpu_info()
        cap = getattr(info, "vmem_capacity_bytes", None)
    except Exception:
        cap = None
    if not cap:
        return 48 * 1024 * 1024
    return min(int(cap) * 3 // 4, 100 * 1024 * 1024)


def _is_v5e():
    try:
        kind = jax.devices()[0].device_kind.lower()
    except Exception:
        return False
    return ("v5 lite" in kind) or ("v5e" in kind) or ("v5litepod" in kind)


def _pick_tile(dim, target, align):
    """Largest tile <= target that is an `align`-multiple divisor of `dim`,
    falling back to the full dimension (always a legal block shape)."""
    if dim <= target:
        return dim
    t = (target // align) * align
    while t >= align:
        if dim % t == 0:
            return t
        t -= align
    return dim


# ----------------------------------------------------------------------------
# Kernel 1: Conv1D (GPT-2 style linear): out = x @ W + b.
# ----------------------------------------------------------------------------
def _linear_resident_kernel(x_ref, w_ref, b_ref, o_ref, *, compute_dtype):
    # Whole weight is VMEM-resident (constant index_map -> fetched once).
    o_ref[...] = (
        jnp.dot(x_ref[...].astype(compute_dtype),
                w_ref[...].astype(compute_dtype),
                preferred_element_type=jnp.float32)
        + b_ref[...]
    ).astype(o_ref.dtype)


def _linear_tiled_kernel(x_ref, w_ref, b_ref, o_ref, acc_ref, *, compute_dtype):
    k = pl.program_id(2)

    @pl.when(k == 0)
    def _init():
        acc_ref[...] = jnp.zeros(acc_ref.shape, acc_ref.dtype)

    acc_ref[...] += jnp.dot(
        x_ref[...].astype(compute_dtype),
        w_ref[...].astype(compute_dtype),
        preferred_element_type=jnp.float32,
    )

    @pl.when(k == pl.num_programs(2) - 1)
    def _finalize():
        o_ref[...] = (acc_ref[...] + b_ref[...]).astype(o_ref.dtype)


def conv1d(x2d, w, b, *, out_dtype, compute_dtype, vmem_limit,
           weight_resident=None,
           tm_target=512, tn_target=512, tk_target=2048):
    """out[M, N] = x[M, K] @ W[K, N] + b[N]."""
    M, K = x2d.shape
    Kw, N = w.shape
    assert K == Kw
    b2d = b.reshape(1, N)
    out_itemsize = np.dtype(out_dtype).itemsize

    cost = pl.CostEstimate(
        flops=int(2 * M * K * N),
        transcendentals=0,
        bytes_accessed=int(M * K * x2d.dtype.itemsize
                           + K * N * w.dtype.itemsize
                           + N * b.dtype.itemsize
                           + M * N * out_itemsize),
    )

    # ---- Path A: VMEM-resident weight (1-D grid over M) --------------------
    tm_res = _pick_tile(M, tm_target, 8)
    resident_bytes = (2 * K * N * w.dtype.itemsize          # W (double buffered)
                      + 2 * tm_res * K * x2d.dtype.itemsize  # x tiles
                      + 2 * tm_res * N * out_itemsize        # out tiles
                      + 2 * N * b.dtype.itemsize)            # bias
    if weight_resident is None:
        weight_resident = resident_bytes <= int(0.6 * vmem_limit)

    if weight_resident:
        grid = (M // tm_res,)
        return pl.pallas_call(
            functools.partial(_linear_resident_kernel,
                              compute_dtype=compute_dtype),
            out_shape=jax.ShapeDtypeStruct((M, N), out_dtype),
            grid=grid,
            in_specs=[
                pl.BlockSpec((tm_res, K), lambda i: (i, 0)),
                pl.BlockSpec((K, N), lambda i: (0, 0)),   # fetched once, reused
                pl.BlockSpec((1, N), lambda i: (0, 0)),
            ],
            out_specs=pl.BlockSpec((tm_res, N), lambda i: (i, 0)),
            compiler_params=pltpu.CompilerParams(
                dimension_semantics=("parallel",),
                vmem_limit_bytes=vmem_limit,
            ),
            cost_estimate=cost,
        )(x2d, w, b2d)

    # ---- Path B: (M, N, K)-tiled with f32 VMEM accumulator -----------------
    tm = _pick_tile(M, tm_target, 8)
    tn = _pick_tile(N, tn_target, 128)
    tk = _pick_tile(K, tk_target, 128)
    grid = (M // tm, N // tn, K // tk)
    return pl.pallas_call(
        functools.partial(_linear_tiled_kernel, compute_dtype=compute_dtype),
        out_shape=jax.ShapeDtypeStruct((M, N), out_dtype),
        grid=grid,
        in_specs=[
            pl.BlockSpec((tm, tk), lambda i, j, k: (i, k)),
            pl.BlockSpec((tk, tn), lambda i, j, k: (k, j)),
            pl.BlockSpec((1, tn), lambda i, j, k: (0, j)),
        ],
        out_specs=pl.BlockSpec((tm, tn), lambda i, j, k: (i, j)),
        scratch_shapes=[pltpu.VMEM((tm, tn), jnp.float32)],
        compiler_params=pltpu.CompilerParams(
            dimension_semantics=("parallel", "parallel", "arbitrary"),
            vmem_limit_bytes=vmem_limit,
        ),
        cost_estimate=cost,
    )(x2d, w, b2d)


# ----------------------------------------------------------------------------
# Kernel 2: causal attention, flash-style over (batch, q-tile, kv-tile).
# Semantics of GPT2Attention._attn:
#   w = (q @ k^T) * scale ; w = where(causal, w, -10000.0)
#   p = softmax(w) (f32)  ; o = p @ v
# ----------------------------------------------------------------------------
def _attn_kernel(q_ref, k_ref, v_ref, o_ref, m_ref, l_ref, acc_ref, *,
                 num_heads, head_dim, tile, scale, compute_dtype, exp_dtype,
                 approx_recip):
    H, D, T = num_heads, head_dim, tile
    qi = pl.program_id(1)
    ki = pl.program_id(2)

    @pl.when(ki == 0)
    def _init():
        m_ref[...] = jnp.full(m_ref.shape, -jnp.inf, dtype=m_ref.dtype)
        l_ref[...] = jnp.zeros(l_ref.shape, l_ref.dtype)
        acc_ref[...] = jnp.zeros(acc_ref.shape, acc_ref.dtype)

    def _update(apply_mask):
        if apply_mask:  # only built for the diagonal KV tile
            rows = qi * T + lax.broadcasted_iota(jnp.int32, (T, T), 0)
            cols = ki * T + lax.broadcasted_iota(jnp.int32, (T, T), 1)
            visible = cols <= rows
        # TODO(synk): a lax.fori_loop over heads would bound vreg live ranges,
        # but it needs a traced lane-dim slice start (pl.ds with dynamic,
        # non-128-aligned offset), which is not robustly lowered by Mosaic,
        # so the head loop stays statically unrolled.
        for h in range(H):
            sl = pl.ds(h * D, D)
            # Fold the softmax scale into the (T, D) q tile (cheaper than
            # scaling the (T, T) score matrix).
            q_h = (q_ref[0, :, sl] * scale).astype(compute_dtype)   # (T, D)
            k_h = k_ref[0, :, sl].astype(compute_dtype)             # (T, D)
            v_h = v_ref[0, :, sl].astype(compute_dtype)             # (T, D)
            # QK^T without materializing a transpose: contract last dims.
            s = lax.dot_general(q_h, k_h, (((1,), (1,)), ((), ())),
                                preferred_element_type=jnp.float32)
            if apply_mask:
                s = jnp.where(visible, s, jnp.float32(-10000.0))
            m_prev = m_ref[h]                                       # (T, 1) f32
            m_new = jnp.maximum(m_prev, jnp.max(s, axis=-1, keepdims=True))
            alpha = jnp.exp(m_prev - m_new)                         # (T, 1) f32
            # Exponent in exp_dtype (bf16 on v6e/v7x -> ~2x EUP rate); the
            # running state and row-sum accumulation stay in f32.
            p = jnp.exp((s - m_new).astype(exp_dtype))              # (T, T)
            l_ref[h] = alpha * l_ref[h] + jnp.sum(
                p, axis=-1, keepdims=True, dtype=jnp.float32)
            pv = lax.dot_general(p.astype(compute_dtype), v_h,
                                 (((1,), (0,)), ((), ())),
                                 preferred_element_type=jnp.float32)
            acc_ref[:, sl] = alpha * acc_ref[:, sl] + pv
            m_ref[h] = m_new

    @pl.when(ki < qi)          # fully visible KV tile: no mask work at all
    def _below_diag():
        _update(apply_mask=False)

    @pl.when(ki == qi)         # diagonal KV tile: apply the causal mask
    def _diag():
        _update(apply_mask=True)
    # ki > qi: fully masked tile -> compute skipped AND (via the clamped k/v
    # index_map) the K/V DMA skipped; exp underflows to exactly 0 in the f32
    # reference, so results are identical.

    @pl.when(ki == pl.num_programs(2) - 1)
    def _finalize():
        for h in range(H):
            sl = pl.ds(h * D, D)
            inv = pl.reciprocal(l_ref[h], approx=approx_recip)      # EUP slot
            o_ref[0, :, sl] = (acc_ref[:, sl] * inv).astype(o_ref.dtype)


def _q_index_map(col):
    return lambda b, qi, ki: (b, qi, col)


def _kv_index_map(col):
    # Clamp the KV block index to the q block index: for fully-masked tiles
    # (ki > qi) the block index equals the previous step's, so the pipeline
    # skips the K/V fetch entirely (~45% of K/V HBM traffic removed).
    return lambda b, qi, ki: (b, jnp.minimum(ki, qi), col)


def causal_attention(q_arr, k_arr, v_arr, q_col, k_col, v_col, *,
                     seq_len, embed_dim, num_heads, scale,
                     out_dtype, compute_dtype, exp_dtype, approx_reciprocal,
                     vmem_limit, tile_target=256):
    """All heads handled per program; q/k/v selected by column-block index
    (q_col/k_col/v_col) so a fused [B, S, 3E] qkv tensor needs no splitting."""
    B = q_arr.shape[0]
    S, E, H = seq_len, embed_dim, num_heads
    D = E // H
    T = _pick_tile(S, tile_target, 8)
    if T > tile_target and T * T * 4 > 16 * 1024 * 1024:
        raise ValueError(
            f"attention tile fell back to T={T} (seq_len={S} has no 8-aligned "
            f"divisor <= {tile_target}); pad seq_len or raise tile_target")
    n_tiles = S // T
    blk = (1, T, E)
    # NOTE(v7x): keep B * n_tiles >= 2 (and even) so both TensorCores get work
    # when the grid's parallel axes are sharded across cores.

    cost = pl.CostEstimate(
        flops=int(4 * B * H * S * S * D) // 2,        # causal: ~half the tiles
        transcendentals=int(B * H * S * S) // 2,
        bytes_accessed=int(3 * B * S * E * q_arr.dtype.itemsize
                           + B * S * E * np.dtype(out_dtype).itemsize),
    )
    kernel = functools.partial(
        _attn_kernel, num_heads=H, head_dim=D, tile=T, scale=scale,
        compute_dtype=compute_dtype, exp_dtype=exp_dtype,
        approx_recip=approx_reciprocal)

    return pl.pallas_call(
        kernel,
        out_shape=jax.ShapeDtypeStruct((B, S, E), out_dtype),
        grid=(B, n_tiles, n_tiles),
        in_specs=[
            pl.BlockSpec(blk, _q_index_map(q_col)),
            pl.BlockSpec(blk, _kv_index_map(k_col)),
            pl.BlockSpec(blk, _kv_index_map(v_col)),
        ],
        out_specs=pl.BlockSpec(blk, lambda b, qi, ki: (b, qi, 0)),
        scratch_shapes=[
            pltpu.VMEM((H, T, 1), jnp.float32),   # running max
            pltpu.VMEM((H, T, 1), jnp.float32),   # running softmax denominator
            pltpu.VMEM((T, E), jnp.float32),      # lane-dense output accumulator
        ],
        compiler_params=pltpu.CompilerParams(
            dimension_semantics=("parallel", "parallel", "arbitrary"),
            vmem_limit_bytes=vmem_limit,
        ),
        cost_estimate=cost,
    )(q_arr, k_arr, v_arr)


# ----------------------------------------------------------------------------
# GPT2AttentionFlex forward (self-attention path, defaults: no layer_past,
# no attention_mask / head_mask, use_cache=False, output_attentions=False).
# ----------------------------------------------------------------------------
class GPT2AttentionFlexPallas:
    def __init__(self, key, hidden_size, num_heads, layer_idx=0,
                 scale_attn_weights=True, scale_attn_by_inverse_layer_idx=False,
                 compute_dtype=jnp.bfloat16,
                 exp_dtype=None,
                 approx_reciprocal=False,
                 attn_tile_target=None,
                 conv_weight_resident=None,
                 conv_tm_target=512, conv_tn_target=512, conv_tk_target=2048):
        self.embed_dim = hidden_size
        self.num_heads = num_heads
        self.head_dim = hidden_size // num_heads
        if self.head_dim * num_heads != hidden_size:
            raise ValueError("hidden_size must be divisible by num_heads")
        self.layer_idx = layer_idx
        self.compute_dtype = compute_dtype
        self.approx_reciprocal = approx_reciprocal
        self.conv_weight_resident = conv_weight_resident
        self.conv_tm_target = conv_tm_target
        self.conv_tn_target = conv_tn_target
        self.conv_tk_target = conv_tk_target

        self.vmem_limit = _vmem_limit_bytes()
        is_v5e = _is_v5e()
        if attn_tile_target is None:
            # v5e is closest to the HBM roofline -> larger KV tiles re-stream
            # less; v6e/v7x keep a moderate tile (EUP/VPU-bound regime).
            attn_tile_target = 512 if is_v5e else 256
        self.attn_tile_target = attn_tile_target
        if exp_dtype is None:
            # bf16 exponent only where the EUP has a bf16 path (v6e/v7x).
            exp_dtype = (jnp.bfloat16
                         if (compute_dtype == jnp.bfloat16 and not is_v5e)
                         else jnp.float32)
        self.exp_dtype = exp_dtype

        scale = 1.0
        if scale_attn_weights:
            scale /= float(self.head_dim) ** 0.5
        if scale_attn_by_inverse_layer_idx:
            scale /= float(layer_idx + 1)
        self.scale = scale

        k1, k2 = jax.random.split(key)
        # Conv1D convention: weight [in_features, out_features], bias [out].
        self.c_attn_w = 0.02 * jax.random.normal(
            k1, (hidden_size, 3 * hidden_size), dtype=jnp.float32)
        self.c_attn_b = jnp.zeros((3 * hidden_size,), dtype=jnp.float32)
        self.c_proj_w = 0.02 * jax.random.normal(
            k2, (hidden_size, hidden_size), dtype=jnp.float32)
        self.c_proj_b = jnp.zeros((hidden_size,), dtype=jnp.float32)

    def __call__(self, hidden_states):
        B, S, E = hidden_states.shape
        H = self.num_heads
        cdt = self.compute_dtype
        interm_dtype = cdt  # bf16 activations between kernels when cdt==bf16

        # MXU operands in compute_dtype (halves weight/activation HBM traffic
        # when bf16); f32 master weights kept for reference checking.
        c_attn_w = self.c_attn_w.astype(cdt)
        c_proj_w = self.c_proj_w.astype(cdt)

        x2d = hidden_states.reshape(B * S, E)

        # qkv projection (Conv1D): [B*S, 3E]
        qkv = conv1d(x2d, c_attn_w, self.c_attn_b,
                     out_dtype=interm_dtype, compute_dtype=cdt,
                     vmem_limit=self.vmem_limit,
                     weight_resident=self.conv_weight_resident,
                     tm_target=self.conv_tm_target,
                     tn_target=self.conv_tn_target,
                     tk_target=self.conv_tk_target)
        qkv = qkv.reshape(B, S, 3 * E)

        attn_kwargs = dict(
            seq_len=S, embed_dim=E, num_heads=H, scale=self.scale,
            out_dtype=interm_dtype, compute_dtype=cdt,
            exp_dtype=self.exp_dtype,
            approx_reciprocal=self.approx_reciprocal,
            vmem_limit=self.vmem_limit,
            tile_target=self.attn_tile_target)

        if E % 128 == 0:
            # Zero-copy: q/k/v column selection folded into the BlockSpec
            # index_map on the fused qkv tensor (no split, no head transposes).
            attn = causal_attention(qkv, qkv, qkv, 0, 1, 2, **attn_kwargs)
        else:
            # Small / unaligned hidden sizes: block last-dim must be a multiple
            # of 128 or the full array dim, so split into three contiguous
            # [B, S, E] slabs (still no split_heads/merge_heads transposes).
            q, k, v = jnp.split(qkv, 3, axis=2)
            attn = causal_attention(q, k, v, 0, 0, 0, **attn_kwargs)

        # output projection (Conv1D) back to float32
        out2d = conv1d(attn.reshape(B * S, E), c_proj_w, self.c_proj_b,
                       out_dtype=jnp.float32, compute_dtype=cdt,
                       vmem_limit=self.vmem_limit,
                       weight_resident=self.conv_weight_resident,
                       tm_target=self.conv_tm_target,
                       tn_target=self.conv_tn_target,
                       tk_target=self.conv_tk_target)
        out = out2d.reshape(B, S, E)

        # attn_dropout / resid_dropout are identity in eval mode.
        present = None  # use_cache=False
        # TODO(synk): layer_past / cross-attention (q_attn) / attention_mask /
        # head_mask / output_attentions paths are not implemented (defaults only).
        return out, present


# ----------------------------------------------------------------------------
# Pure-JAX f32 reference for correctness checking.
# ----------------------------------------------------------------------------
def reference_forward(mod, hidden_states):
    B, S, E = hidden_states.shape
    H, D = mod.num_heads, mod.head_dim
    qkv = hidden_states.reshape(B * S, E) @ mod.c_attn_w + mod.c_attn_b
    qkv = qkv.reshape(B, S, 3 * E)
    q, k, v = jnp.split(qkv, 3, axis=2)
    q = q.reshape(B, S, H, D).transpose(0, 2, 1, 3)
    k = k.reshape(B, S, H, D).transpose(0, 2, 1, 3)
    v = v.reshape(B, S, H, D).transpose(0, 2, 1, 3)
    w = jnp.einsum("bhqd,bhkd->bhqk", q, k) * mod.scale
    causal = jnp.tril(jnp.ones((S, S), dtype=bool))
    w = jnp.where(causal[None, None], w, -10000.0)
    p = jax.nn.softmax(w, axis=-1)
    o = jnp.einsum("bhqk,bhkd->bhqd", p, v)
    o = o.transpose(0, 2, 1, 3).reshape(B, S, E)
    return (o.reshape(B * S, E) @ mod.c_proj_w + mod.c_proj_b).reshape(B, S, E)


if __name__ == "__main__":
    key = jax.random.PRNGKey(0)
    k_params1, k_input, k_params2 = jax.random.split(key, 3)

    # --- Test 1: strict float32 path, toy config (B=2, S=8, E=32, H=4),
    #             VMEM-resident-weight conv1d path. -------------------------
    B, S, E, H = 2, 8, 32, 4
    mod = GPT2AttentionFlexPallas(k_params1, hidden_size=E, num_heads=H,
                                  layer_idx=0, compute_dtype=jnp.float32)
    x = jax.random.normal(k_input, (B, S, E), dtype=jnp.float32)
    out, present = mod(x)
    out = jax.block_until_ready(out)
    ref = reference_forward(mod, x)
    assert out.shape == (B, S, E)
    assert present is None
    assert jnp.allclose(out, ref, atol=1e-5, rtol=1e-5), "f32 path mismatch"

    # --- Test 2: bf16 MXU operands + bf16 softmax exponent, fused-qkv head
    #             indexing, multi-tile flash attention with masked-tile DMA
    #             skipping, forced (M,N,K)-tiled conv1d with K accumulation
    #             (B=1, S=32, E=256, H=4, D=64). ----------------------------
    B2, S2, E2, H2 = 1, 32, 256, 4
    mod2 = GPT2AttentionFlexPallas(
        k_params2, hidden_size=E2, num_heads=H2, layer_idx=1,
        scale_attn_by_inverse_layer_idx=True,
        compute_dtype=jnp.bfloat16,
        attn_tile_target=16,           # 2 q-tiles x 2 kv-tiles
        conv_weight_resident=False,    # exercise the tiled accumulation path
        conv_tm_target=16, conv_tn_target=128, conv_tk_target=128)
    x2 = jax.random.normal(k_input, (B2, S2, E2), dtype=jnp.float32)
    out2, _ = mod2(x2)
    out2 = jax.block_until_ready(out2)
    ref2 = reference_forward(mod2, x2)
    assert out2.shape == (B2, S2, E2)
    assert jnp.allclose(out2, ref2, atol=2e-2, rtol=5e-2), (
        "bf16 path mismatch, max abs err = "
        f"{float(jnp.max(jnp.abs(out2 - ref2)))}")

    print("KERNEL_OK")
</pallas_src>

<mosaic_0001>
module attributes {stable_mosaic.version = 11 : i64} {
  func.func @_linear_resident_kernel(%arg0: i32, %arg1: memref<16x32xf32, #tpu.memory_space<vmem>>, %arg2: memref<32x96xf32, #tpu.memory_space<vmem>>, %arg3: memref<1x96xf32, #tpu.memory_space<vmem>>, %arg4: memref<16x96xf32, #tpu.memory_space<vmem>>) attributes {dimension_semantics = [#tpu.dimension_semantics<parallel>], iteration_bounds = array<i64: 1>, scalar_prefetch = 0 : i64, scratch_operands = 0 : i64, tpu.core_type = #tpu.core_type<tc>, window_params = [{transform_indices = @transform_0, window_bounds = array<i64: 16, 32>}, {pipeline_mode = #tpu.pipeline_mode<synchronous>, transform_indices = @transform_1, window_bounds = array<i64: 32, 96>}, {pipeline_mode = #tpu.pipeline_mode<synchronous>, transform_indices = @transform_2, window_bounds = array<i64: 1, 96>}, {transform_indices = @transform_3, window_bounds = array<i64: 16, 96>}]} {
    %c0 = arith.constant 0 : index
    %c0_0 = arith.constant 0 : index
    %0 = vector.load %arg1[%c0, %c0_0] : memref<16x32xf32, #tpu.memory_space<vmem>>, vector<16x32xf32>
    %c0_1 = arith.constant 0 : index
    %c0_2 = arith.constant 0 : index
    %1 = vector.load %arg2[%c0_1, %c0_2] : memref<32x96xf32, #tpu.memory_space<vmem>>, vector<32x96xf32>
    %cst = arith.constant dense<0.000000e+00> : vector<16x96xf32>
    %2 = tpu.matmul %0, %1, %cst {dimension_numbers = #tpu.dot_dimension_numbers<[1], [0], [0], [1], [0, 0, 1, 1], [], []>} : vector<16x32xf32>, vector<32x96xf32>, vector<16x96xf32> -> vector<16x96xf32>
    %c0_3 = arith.constant 0 : index
    %c0_4 = arith.constant 0 : index
    %3 = vector.load %arg3[%c0_3, %c0_4] : memref<1x96xf32, #tpu.memory_space<vmem>>, vector<1x96xf32>
    %4 = vector.broadcast %3 : vector<1x96xf32> to vector<16x96xf32>
    %5 = arith.addf %2, %4 : vector<16x96xf32>
    %c0_5 = arith.constant 0 : index
    %c0_6 = arith.constant 0 : index
    %6 = vector.load %arg4[%c0_5, %c0_6] : memref<16x96xf32, #tpu.memory_space<vmem>>, vector<16x96xf32>
    tpu.vector_store %arg4[%c0_5, %c0_6], %5 {strides = array<i32>} : memref<16x96xf32, #tpu.memory_space<vmem>>, vector<16x96xf32>,
    return
  }
  func.func @transform_0(%arg0: i32) -> (i32, i32) {
    %c0_i32 = arith.constant 0 : i32
    %c0_i32_0 = arith.constant 0 : i32
    return %arg0, %c0_i32 : i32, i32
  }
  func.func @transform_1(%arg0: i32) -> (i32, i32) {
    %c0_i32 = arith.constant 0 : i32
    %c0_i32_0 = arith.constant 0 : i32
    %c0_i32_1 = arith.constant 0 : i32
    return %c0_i32, %c0_i32_0 : i32, i32
  }
  func.func @transform_2(%arg0: i32) -> (i32, i32) {
    %c0_i32 = arith.constant 0 : i32
    %c0_i32_0 = arith.constant 0 : i32
    %c0_i32_1 = arith.constant 0 : i32
    return %c0_i32, %c0_i32_0 : i32, i32
  }
  func.func @transform_3(%arg0: i32) -> (i32, i32) {
    %c0_i32 = arith.constant 0 : i32
    %c0_i32_0 = arith.constant 0 : i32
    return %arg0, %c0_i32 : i32, i32
  }
}

</mosaic_0001>

<llo_original>
// kernel: tpu_custom_call.1
$region0: #{tpu_custom_call.1}
  #allocation0 [shape = 'u32[]', space=smem, size = 0x4, offset = 0x4, fixed_abs, tag = 'smem constant byte address 0x4 - core index']
  #allocation1 [shape = 'u32[144,128]{1,0:T(1,128)}', space=vmem, size = 0x12000, scoped, tag = 'internal scratch']
  %s0 = inlined_call_operand.hbm [shape: f32[16,32], index: 0, kind: input, shape index: {}]
  %s1 = inlined_call_operand.hbm [shape: f32[32,96], index: 1, kind: input, shape index: {}]
  %s2 = inlined_call_operand.vmem [shape: f32[1,96], index: 2, kind: input, shape index: {}]
  %s3 = inlined_call_operand.hbm [shape: f32[16,96], index: 3, kind: output, shape index: {}]
  %s4 = sld [smem:[#allocation0]]
  $region30: #{tpu_custom_call.1} parent=0
    _
  %s6 = ssub.s32 1, %s4
  %s7 = scalar_select 0, %s6, %s4
  $region1: #{tpu_custom_call.1} parent=0
    #allocation2 [shape = 'u8[8192]{0}', space=vmem, size = 0x2000, scoped, tag = 'input window, operand 0, single buffered']
    #allocation3 [shape = 's32[1]{0}', space=sflag, size = 0x4, scoped, tag = 'scoped memory for tpu_custom_call.1']
    #allocation4 [shape = 's32[1]{0}', space=sflag, size = 0x4, scoped, tag = 'scoped memory for tpu_custom_call.1']
    #allocation5 [shape = 'u8[16384]{0}', space=vmem, size = 0x4000, scoped, tag = 'input window, operand 1, single buffered']
    #allocation6 [shape = 's32[1]{0}', space=sflag, size = 0x4, scoped, tag = 'scoped memory for tpu_custom_call.1']
    #allocation7 [shape = 'u8[8192]{0}', space=vmem, size = 0x2000, scoped, tag = 'output window, operand 0, single buffered']
    %8 = vsyncpa [#allocation3], 0
    %9 = vsyncpa [#allocation6], 0
    %10 = vsyncpa [#allocation4], 0
    // Predicated region
    $region2: #{tpu_custom_call.1} parent=1 // pred_check
      _
    $region3: #{tpu_custom_call.1} parent=1 // pred_check_branch
      %12 = sbr.rel (0) target = $region5
    $region4: #{tpu_custom_call.1} parent=1 // pred_region
      %s14 = ssub.s32 256, 256
      %15 = vsyncadd [#allocation3], %s14
      %s16 = sshll.u32 [#allocation2], 4
      %s17 = int_to_ptr.vmem [resolvable:$true] %s16
      %22 = dma.hbm_to_vmem [thread:$0]  %s0, 256, %s17, [#allocation3], 128, 128, 8
    $region5: #{tpu_custom_call.1} parent=1 // pred_fallthru
      _
    // Predicated region
    $region6: #{tpu_custom_call.1} parent=1 // pred_check
      _
    $region7: #{tpu_custom_call.1} parent=1 // pred_check_branch
      %24 = sbr.rel (0) target = $region9
    $region8: #{tpu_custom_call.1} parent=1 // pred_region
      %s26 = ssub.s32 512, 512
      %27 = vsyncadd [#allocation6], %s26
      %s28 = sshll.u32 [#allocation5], 4
      %s29 = int_to_ptr.vmem [resolvable:$true] %s28
      %34 = dma.hbm_to_vmem [thread:$0]  %s1, 512, %s29, [#allocation6], 128, 128, 8
    $region9: #{tpu_custom_call.1} parent=1 // pred_fallthru
      _
    // Predicated region
    $region10: #{tpu_custom_call.1} parent=1 // pred_check
      _
    $region11: #{tpu_custom_call.1} parent=1 // pred_check_branch
      %36 = sbr.rel (0) target = $region13
    $region12: #{tpu_custom_call.1} parent=1 // pred_region
      _
    $region13: #{tpu_custom_call.1} parent=1 // pred_fallthru
      _
    // Predicated region
    $region14: #{tpu_custom_call.1} parent=1 // pred_check
      _
    $region15: #{tpu_custom_call.1} parent=1 // pred_check_branch
      %38 = sbr.rel (0) target = $region17
    $region16: #{tpu_custom_call.1} parent=1 // pred_region
      %39 = dma.done [#allocation3], 256
    $region17: #{tpu_custom_call.1} parent=1 // pred_fallthru
      _
    // Predicated region
    $region18: #{tpu_custom_call.1} parent=1 // pred_check
      _
    $region19: #{tpu_custom_call.1} parent=1 // pred_check_branch
      %41 = sbr.rel (0) target = $region21
    $region20: #{tpu_custom_call.1} parent=1 // pred_region
      %42 = dma.done [#allocation6], 512
    $region21: #{tpu_custom_call.1} parent=1 // pred_fallthru
      _
    %v43 = vld [vmem:[#allocation2] sm:$0xff]
    %v44 = vld [vmem:[#allocation2 + $0x8] sm:$0xff]
    %v45 = vld [vmem:[#allocation5] sm:$0xff]
    %v46 = vld [vmem:[#allocation5 + $0x8] sm:$0xff]
    %v47 = vld [vmem:[#allocation5 + $0x10] sm:$0xff]
    %v48 = vld [vmem:[#allocation5 + $0x18] sm:$0xff]
    %v49 = vld [vmem:[%s2] sm:$0x1]
    %v51 = vlaneseq
    %v52 = vshrl.u32 %v51, 7
    %v53 = vsub.s32 0, %v52
    %v54 = vrot.slane %v49, %v53
    %vm56 = vcmask 261120
    %v58 = vsel %vm56, %v43, 0
    %v61 = vsel %vm56, %v44, 0
    %63 = vmatprep.subr.mxu0 0.0
    %64 = vmatpush1.msra.mxu0 %v45
    %65 = vmatprep.subr.mxu0 0.0
    %66 = vmatpush1.msra.mxu0 %v46
    %67 = vmatprep.subr.mxu0 0.0
    %68 = vmatpush1.msra.mxu0 %v47
    %69 = vmatprep.subr.mxu0 0.0
    %70 = vmatpush1.msra.mxu0 %v48
    %71 = vmatprep.subr.mxu0 0.0
    %72 = vmatpush1.msra.mxu0 0.0
    %73 = vmatprep.subr.mxu0 0.0
    %74 = vmatpush1.msra.mxu0 0.0
    %75 = vmatprep.subr.mxu0 0.0
    %76 = vmatpush1.msra.mxu0 0.0
    %77 = vmatprep.subr.mxu0 0.0
    %78 = vmatpush1.msra.mxu0 0.0
    %79 = vmatprep.subr.mxu0 0.0
    %80 = vmatpush1.msra.mxu0 0.0
    %81 = vmatprep.subr.mxu0 0.0
    %82 = vmatpush1.msra.mxu0 0.0
    %83 = vmatprep.subr.mxu0 0.0
    %84 = vmatpush1.msra.mxu0 0.0
    %85 = vmatprep.subr.mxu0 0.0
    %86 = vmatpush1.msra.mxu0 0.0
    %87 = vmatprep.subr.mxu0 0.0
    %88 = vmatpush1.msra.mxu0 0.0
    %89 = vmatprep.subr.mxu0 0.0
    %90 = vmatpush1.msra.mxu0 0.0
    %91 = vmatprep.subr.mxu0 0.0
    %92 = vmatpush1.msra.mxu0 0.0
    %93 = vmatprep.subr.mxu0 0.0
    %94 = vmatpush1.msra.mxu0 0.0
    %95 = vmatprep.subr.mxu0 0.0
    %96 = vmatpush1.msra.mxu0 0.0
    %97 = vmatprep.subr.mxu0 0.0
    %98 = vmatpush1.msra.mxu0 0.0
    %99 = vmatprep.subr.mxu0 0.0
    %100 = vmatpush1.msra.mxu0 0.0
    %101 = vmatprep.subr.mxu0 0.0
    %102 = vmatpush1.msra.mxu0 0.0
    %103 = vmatprep.subr.mxu0 0.0
    %104 = vmatpush1.msra.mxu0 0.0
    %105 = vmatprep.subr.mxu0 0.0
    %106 = vmatpush1.msra.mxu0 0.0
    %107 = vmatprep.subr.mxu0 0.0
    %108 = vmatpush1.msra.mxu0 0.0
    %109 = vmatprep.subr.mxu0 0.0
    %110 = vmatpush1.msra.mxu0 0.0
    %111 = vmatprep.subr.mxu0 0.0
    %112 = vmatpush1.msra.mxu0 0.0
    %113 = vmatprep.subr.mxu0 0.0
    %114 = vmatpush1.msra.mxu0 0.0
    %115 = vmatprep.subr.mxu0 0.0
    %116 = vmatpush1.msra.mxu0 0.0
    %117 = vmatprep.subr.mxu0 0.0
    %118 = vmatpush1.msra.mxu0 0.0
    %119 = vmatprep.subr.mxu0 0.0
    %120 = vmatpush1.msra.mxu0 0.0
    %121 = vmatprep.subr.mxu0 0.0
    %122 = vmatpush1.msra.mxu0 0.0
    %123 = vmatprep.subr.mxu0 0.0
    %124 = vmatpush1.msra.mxu0 0.0
    %125 = vmatprep.subr.mxu0 0.0
    %126 = vmatpush1.msra.mxu0 0.0
    %127 = vmatprep.mubr.f32.mxu0 0.0
    %128 = vmatmul.mubr.f32.gmra.mrb[0].mxu0 %v58
    %v129 = vpop.f32.mrb[0].mxu0
    %v130 = vadd.f32 %v54, %v129
    %v131 = vpop.f32.mrb[0].mxu0
    %132 = vmatprep.mubr.f32.mxu0 0.0
    %133 = vmatmul.mubr.f32.gmra.mrb[0].mxu0 %v61
    %v134 = vpop.f32.mrb[0].mxu0
    %v135 = vadd.f32 %v54, %v134
    %v136 = vpop.f32.mrb[0].mxu0
    %137 = vdwg.mxu0
    %vm138 = vcmask 785408
    %139 = vst.msk [vmem:[#allocation7] sm:$0xff] %vm138, %v130
    %140 = vst.msk [vmem:[#allocation7 + $0x8] sm:$0xff] %vm138, %v135
    // Predicated region
    $region22: #{tpu_custom_call.1} parent=1 // pred_check
      _
    $region23: #{tpu_custom_call.1} parent=1 // pred_check_branch
      %142 = sbr.rel (0) target = $region25
    $region24: #{tpu_custom_call.1} parent=1 // pred_region
      %s144 = ssub.s32 256, 256
      %145 = vsyncadd [#allocation4], %s144
      %s146 = sshll.u32 [#allocation7], 4
      %s147 = int_to_ptr.vmem [resolvable:$true] %s146
      %152 = dma.vmem_to_hbm [thread:$0]  %s147, 256, %s3, [#allocation4], 128, 128, 8
    $region25: #{tpu_custom_call.1} parent=1 // pred_fallthru
      _
    // Predicated region
    $region26: #{tpu_custom_call.1} parent=1 // pred_check
      _
    $region27: #{tpu_custom_call.1} parent=1 // pred_check_branch
      %154 = sbr.rel (0) target = $region29
    $region28: #{tpu_custom_call.1} parent=1 // pred_region
      %155 = dma.done [#allocation4], 256
    $region29: #{tpu_custom_call.1} parent=1 // pred_fallthru
      _
    %156 = vsyncpa [#allocation3], 1
    %157 = vsyncpa [#allocation6], 1
    %158 = vsyncpa [#allocation4], 1

</llo_original>
